<compile_context>
chip_gen: v5e
topology: v5e:2x2
jax: 0.10.0
libtpu: 0.0.40
codegen_flags: <defaults>
</compile_context>

<pallas_src>
import functools

import jax
import jax.numpy as jnp
from jax import lax
from jax.experimental import pallas as pl
from jax.experimental.pallas import tpu as pltpu

_LANES = 128
_TILE_BYTES = 4 * 1024 * 1024        # logits bytes per tile (Pallas double-buffers)
_VMEM_LIMIT = 32 * 1024 * 1024       # conservative: fits v5e/v6e/v7x scoped defaults


def _compiler_params():
    return pltpu.CompilerParams(
        dimension_semantics=("arbitrary",),   # single grid axis carries the accumulator
        vmem_limit_bytes=_VMEM_LIMIT,
    )


def _reciprocal(x):
    """1/x via the EUP approx reciprocal + one Newton step (~f32 accurate)."""
    r = pl.reciprocal(x, approx=True)
    return r * (2.0 - x * r)


def _focal_terms(x, y, alpha, gamma):
    """Element-wise focal loss terms. x: f32 logits, y: f32 one-hot in {0,1}."""
    e = jnp.exp(-jnp.abs(x))                          # exp(-|x|): shared by ce and pt
    ce = jnp.maximum(x, 0.0) - x * y + jnp.log1p(e)   # stable BCE-with-logits

    # pt = exp(-ce) == sigmoid(z) with z = x if y==1 else -x.  Derive it from e
    # instead of paying a second EUP exp: sigmoid(|x|)=1/(1+e), sigmoid(-|x|)=e/(1+e).
    inv = _reciprocal(1.0 + e)
    z = x * (2.0 * y - 1.0)
    pt = jnp.where(z >= 0.0, inv, e * inv)

    omp = 1.0 - pt
    g = float(gamma)
    if g == 0.0:
        mod = jnp.ones_like(omp)
    elif g.is_integer() and 1.0 <= g <= 8.0:
        mod = omp                                      # repeated VPU multiplies, no pow
        for _ in range(int(g) - 1):
            mod = mod * omp
    else:
        # TODO(synk): non-integer gamma still pays one pow (exp+log) on the EUP.
        mod = jnp.power(jnp.maximum(omp, 0.0), g)
    return alpha * mod * ce


def _accumulate(acc_ref, focal, tile_rows, acc_rows, width):
    """Fold a (tile_rows, width) tile into a (acc_rows, width) accumulator."""
    if acc_rows == tile_rows:
        acc_ref[...] += focal
    else:
        # Layout-preserving split of sublane blocks; sum over the leading axis is
        # plain cross-vreg VPU adds (no XLU).
        acc_ref[...] += focal.reshape(tile_rows // acc_rows, acc_rows, width).sum(axis=0)


# ----------------------------- row-tiled path (wide C) -----------------------------

def _rowtile_kernel(x_ref, t_ref, out_ref, acc_ref, *,
                    alpha, gamma, n_rows, n_classes, tile_rows, acc_rows):
    i = pl.program_id(0)

    @pl.when(i == 0)
    def _init():
        acc_ref[...] = jnp.zeros_like(acc_ref)

    x = x_ref[...].astype(jnp.float32)                                   # (T, C)
    t = t_ref[...]                                                       # (T, 1) int32
    cls = lax.broadcasted_iota(jnp.int32, (tile_rows, n_classes), 1)
    y = (cls == t).astype(jnp.float32)                                   # one-hot

    focal = _focal_terms(x, y, alpha, gamma)

    # Mask rows of a partial last tile (select also kills NaN/Inf garbage there).
    row = i * tile_rows + lax.broadcasted_iota(jnp.int32, (tile_rows, n_classes), 0)
    focal = jnp.where(row < n_rows, focal, 0.0)

    _accumulate(acc_ref, focal, tile_rows, acc_rows, n_classes)

    @pl.when(i == pl.num_programs(0) - 1)
    def _finalize():
        out_ref[...] = jnp.sum(acc_ref[...], keepdims=True)              # one reduce total


def _sum_rowtile(outputs, targets_i32, alpha, gamma, max_tile_rows=None):
    n, c = outputs.shape
    bytes_per_row = c * outputs.dtype.itemsize
    tile_rows = max(8, min(8192, (_TILE_BYTES // max(bytes_per_row, 1)) // 8 * 8))
    if max_tile_rows is not None:
        tile_rows = max(8, min(tile_rows, max_tile_rows // 8 * 8))
    if n <= tile_rows:
        tile_rows = n                                  # single full-extent block
    acc_rows = 8 if (tile_rows % 8 == 0) else tile_rows
    grid = (pl.cdiv(n, tile_rows),)

    kernel = functools.partial(
        _rowtile_kernel, alpha=float(alpha), gamma=float(gamma),
        n_rows=n, n_classes=c, tile_rows=tile_rows, acc_rows=acc_rows)

    out = pl.pallas_call(
        kernel,
        out_shape=jax.ShapeDtypeStruct((1, 1), jnp.float32),
        grid=grid,
        in_specs=[pl.BlockSpec((tile_rows, c), lambda i: (i, 0)),
                  pl.BlockSpec((tile_rows, 1), lambda i: (i, 0))],
        out_specs=pl.BlockSpec((1, 1), lambda i: (0, 0)),
        scratch_shapes=[pltpu.VMEM((acc_rows, c), jnp.float32)],
        compiler_params=_compiler_params(),
    )(outputs, targets_i32.reshape(n, 1))
    return out[0, 0]


# ------------------------- lane-dense path (C < 128, C | 128) -----------------------

def _lanedense_kernel(x_ref, t_ref, out_ref, acc_ref, *,
                      alpha, gamma, n_classes, n_rows, tile_rows, acc_rows):
    i = pl.program_id(0)

    @pl.when(i == 0)
    def _init():
        acc_ref[...] = jnp.zeros_like(acc_ref)

    x = x_ref[...].astype(jnp.float32)                                   # (T, 128)
    t = t_ref[...].astype(jnp.int32)                                     # (T, 128) int8->i32, -1 == pad
    lane = lax.broadcasted_iota(jnp.int32, (tile_rows, _LANES), 1)
    cls = jnp.bitwise_and(lane, n_classes - 1)       # lane % C (C | 128 => power of 2)
    y = (cls == t).astype(jnp.float32)

    focal = _focal_terms(x, y, alpha, gamma)

    row = i * tile_rows + lax.broadcasted_iota(jnp.int32, (tile_rows, _LANES), 0)
    valid = jnp.logical_and(t >= 0, row < n_rows)
    focal = jnp.where(valid, focal, 0.0)

    _accumulate(acc_ref, focal, tile_rows, acc_rows, _LANES)

    @pl.when(i == pl.num_programs(0) - 1)
    def _finalize():
        out_ref[...] = jnp.sum(acc_ref[...], keepdims=True)


def _sum_lanedense(outputs, targets_i32, alpha, gamma, max_tile_rows=None):
    n, c = outputs.shape
    total = n * c
    rows = pl.cdiv(total, _LANES)
    pad = rows * _LANES - total

    flat_x = outputs.reshape(total)
    flat_t = jnp.repeat(targets_i32.astype(jnp.int8), c)   # per-element class id, 1 B/elem
    if pad:
        flat_x = jnp.concatenate([flat_x, jnp.zeros((pad,), flat_x.dtype)])
        flat_t = jnp.concatenate([flat_t, jnp.full((pad,), -1, jnp.int8)])
    x2d = flat_x.reshape(rows, _LANES)
    t2d = flat_t.reshape(rows, _LANES)

    tile_rows = max(32, (_TILE_BYTES // (_LANES * outputs.dtype.itemsize)) // 32 * 32)
    if max_tile_rows is not None:
        tile_rows = max(32, min(tile_rows, max_tile_rows // 32 * 32))
    if rows <= tile_rows:
        tile_rows = rows                                    # single full-extent block
    acc_rows = 8 if (tile_rows % 8 == 0) else tile_rows
    grid = (pl.cdiv(rows, tile_rows),)

    kernel = functools.partial(
        _lanedense_kernel, alpha=float(alpha), gamma=float(gamma),
        n_classes=c, n_rows=rows, tile_rows=tile_rows, acc_rows=acc_rows)

    out = pl.pallas_call(
        kernel,
        out_shape=jax.ShapeDtypeStruct((1, 1), jnp.float32),
        grid=grid,
        in_specs=[pl.BlockSpec((tile_rows, _LANES), lambda i: (i, 0)),
                  pl.BlockSpec((tile_rows, _LANES), lambda i: (i, 0))],
        out_specs=pl.BlockSpec((1, 1), lambda i: (0, 0)),
        scratch_shapes=[pltpu.VMEM((acc_rows, _LANES), jnp.float32)],
        compiler_params=_compiler_params(),
    )(x2d, t2d)
    return out[0, 0]


# ------------------------------------ wrapper ---------------------------------------

def focal_loss(outputs, targets, *, alpha=1.0, gamma=2.0, reduction="mean",
               max_tile_rows=None):
    """outputs: (N, C) float logits; targets: (N,) integer class ids."""
    if outputs.ndim != 2:
        raise ValueError("outputs must be (N, C)")
    n, c = outputs.shape
    targets_i32 = targets.astype(jnp.int32)

    if c < _LANES and _LANES % c == 0:
        total_sum = _sum_lanedense(outputs, targets_i32, alpha, gamma, max_tile_rows)
    else:
        total_sum = _sum_rowtile(outputs, targets_i32, alpha, gamma, max_tile_rows)

    if reduction == "mean":
        return total_sum / jnp.float32(n * c)
    if reduction == "sum":
        return total_sum
    # TODO(synk): reduction='none' (elementwise (N, C) output) is not implemented here.
    raise NotImplementedError("reduction='none' is not supported by this Pallas kernel")


if __name__ == "__main__":
    def reference(logits, tgt, alpha, gamma):
        x = logits.astype(jnp.float32)
        yh = jax.nn.one_hot(tgt, x.shape[1], dtype=jnp.float32)
        ce = jnp.maximum(x, 0.0) - x * yh + jnp.log1p(jnp.exp(-jnp.abs(x)))
        pt = jnp.exp(-ce)
        return jnp.mean(alpha * (1.0 - pt) ** gamma * ce)

    key = jax.random.PRNGKey(0)
    cases = [
        # (N, C, dtype, alpha, gamma, max_tile_rows)
        (64,  16,  jnp.float32,  1.0,  2.0, None),  # lane-dense, default params
        (30,  16,  jnp.float32,  0.25, 3.0, None),  # lane-dense, lane padding, gamma=3
        (16,  128, jnp.float32,  1.0,  2.0, None),  # row-tiled, single tile
        (200, 256, jnp.bfloat16, 1.0,  2.0, None),  # row-tiled, bf16 logits
        (60,  16,  jnp.float32,  1.0,  1.5, None),  # lane-dense, non-integer gamma
        (100, 48,  jnp.float32,  1.0,  2.0, 32),    # row-tiled, multi-tile + partial edge
        (300, 16,  jnp.float32,  1.0,  2.0, 32),    # lane-dense, multi-tile + partial edge
    ]
    for idx, (n, c, dt, alpha, gamma, mtr) in enumerate(cases):
        key, k1, k2 = jax.random.split(key, 3)
        logits = (jax.random.normal(k1, (n, c), dtype=jnp.float32) * 2.0).astype(dt)
        tgt = jax.random.randint(k2, (n,), 0, c, dtype=jnp.int32)

        got = focal_loss(logits, tgt, alpha=alpha, gamma=gamma, max_tile_rows=mtr)
        jax.block_until_ready(got)
        want = reference(logits, tgt, alpha, gamma)
        assert jnp.allclose(got, want, rtol=5e-4, atol=1e-6), (idx, float(got), float(want))

    print("KERNEL_OK")
</pallas_src>

<mosaic_0001>
module attributes {stable_mosaic.version = 11 : i64} {
  func.func @_lanedense_kernel(%arg0: i32, %arg1: memref<8x128xf32, #tpu.memory_space<vmem>>, %arg2: memref<8x128xi8, #tpu.memory_space<vmem>>, %arg3: memref<1x1xf32, #tpu.memory_space<vmem>>, %arg4: memref<8x128xf32, #tpu.memory_space<vmem>>) attributes {dimension_semantics = [#tpu.dimension_semantics<arbitrary>], iteration_bounds = array<i64: 1>, scalar_prefetch = 0 : i64, scratch_operands = 1 : i64, tpu.core_type = #tpu.core_type<tc>, window_params = [{transform_indices = @transform_0, window_bounds = array<i64: 8, 128>}, {transform_indices = @transform_1, window_bounds = array<i64: 8, 128>}, {pipeline_mode = #tpu.pipeline_mode<synchronous>, transform_indices = @transform_2, window_bounds = array<i64: 1, 1>}]} {
    %c0_i32 = arith.constant 0 : i32
    %0 = arith.cmpi eq, %arg0, %c0_i32 : i32
    %1 = arith.extui %0 : i1 to i32
    %c0_i32_0 = arith.constant 0 : i32
    %2 = arith.cmpi ne, %1, %c0_i32_0 : i32
    scf.if %2 {
      %cst_21 = arith.constant 0.000000e+00 : f32
      %61 = vector.broadcast %cst_21 : f32 to vector<8x128xf32>
      %c0_22 = arith.constant 0 : index
      %c0_23 = arith.constant 0 : index
      %62 = vector.load %arg4[%c0_22, %c0_23] : memref<8x128xf32, #tpu.memory_space<vmem>>, vector<8x128xf32>
      tpu.vector_store %arg4[%c0_22, %c0_23], %61 {strides = array<i32>} : memref<8x128xf32, #tpu.memory_space<vmem>>, vector<8x128xf32>,
    } else {
    }
    %c0 = arith.constant 0 : index
    %c0_1 = arith.constant 0 : index
    %3 = vector.load %arg1[%c0, %c0_1] : memref<8x128xf32, #tpu.memory_space<vmem>>, vector<8x128xf32>
    %c0_2 = arith.constant 0 : index
    %c0_3 = arith.constant 0 : index
    %4 = vector.load %arg2[%c0_2, %c0_3] : memref<8x128xi8, #tpu.memory_space<vmem>>, vector<8x128xi8>
    %5 = arith.extsi %4 : vector<8x128xi8> to vector<8x128xi32>
    %6 = tpu.iota {dimensions = array<i32: 1>} : vector<8x128xi32>
    %c15_i32 = arith.constant 15 : i32
    %7 = vector.broadcast %c15_i32 : i32 to vector<8x128xi32>
    %8 = arith.andi %6, %7 : vector<8x128xi32>
    %9 = arith.cmpi eq, %8, %5 : vector<8x128xi32>
    %10 = arith.extui %9 : vector<8x128xi1> to vector<8x128xi32>
    %11 = arith.sitofp %10 : vector<8x128xi32> to vector<8x128xf32>
    %12 = math.absf %3 : vector<8x128xf32>
    %cst = arith.constant 0.000000e+00 : f32
    %13 = vector.broadcast %cst : f32 to vector<8x128xf32>
    %14 = arith.subf %13, %12 : vector<8x128xf32>
    %15 = math.exp %14 : vector<8x128xf32>
    %cst_4 = arith.constant 0.000000e+00 : f32
    %16 = vector.broadcast %cst_4 : f32 to vector<8x128xf32>
    %17 = arith.maximumf %3, %16 : vector<8x128xf32>
    %18 = arith.mulf %3, %11 : vector<8x128xf32>
    %19 = arith.subf %17, %18 : vector<8x128xf32>
    %20 = math.log1p %15 : vector<8x128xf32>
    %21 = arith.addf %19, %20 : vector<8x128xf32>
    %cst_5 = arith.constant 1.000000e+00 : f32
    %22 = vector.broadcast %cst_5 : f32 to vector<8x128xf32>
    %23 = arith.addf %22, %15 : vector<8x128xf32>
    %24 = tpu.reciprocal %23 {approx = true} : vector<8x128xf32> -> vector<8x128xf32>
    %25 = arith.mulf %23, %24 : vector<8x128xf32>
    %cst_6 = arith.constant 2.000000e+00 : f32
    %26 = vector.broadcast %cst_6 : f32 to vector<8x128xf32>
    %27 = arith.subf %26, %25 : vector<8x128xf32>
    %28 = arith.mulf %24, %27 : vector<8x128xf32>
    %cst_7 = arith.constant 2.000000e+00 : f32
    %29 = vector.broadcast %cst_7 : f32 to vector<8x128xf32>
    %30 = arith.mulf %29, %11 : vector<8x128xf32>
    %cst_8 = arith.constant 1.000000e+00 : f32
    %31 = vector.broadcast %cst_8 : f32 to vector<8x128xf32>
    %32 = arith.subf %30, %31 : vector<8x128xf32>
    %33 = arith.mulf %3, %32 : vector<8x128xf32>
    %cst_9 = arith.constant 0.000000e+00 : f32
    %34 = vector.broadcast %cst_9 : f32 to vector<8x128xf32>
    %35 = arith.cmpf oge, %33, %34 : vector<8x128xf32>
    %36 = arith.mulf %15, %28 : vector<8x128xf32>
    %37 = arith.select %35, %28, %36 : vector<8x128xi1>, vector<8x128xf32>
    %cst_10 = arith.constant 1.000000e+00 : f32
    %38 = vector.broadcast %cst_10 : f32 to vector<8x128xf32>
    %39 = arith.subf %38, %37 : vector<8x128xf32>
    %40 = arith.mulf %39, %39 : vector<8x128xf32>
    %cst_11 = arith.constant 1.000000e+00 : f32
    %41 = vector.broadcast %cst_11 : f32 to vector<8x128xf32>
    %42 = arith.mulf %41, %40 : vector<8x128xf32>
    %43 = arith.mulf %42, %21 : vector<8x128xf32>
    %c8_i32 = arith.constant 8 : i32
    %44 = arith.muli %arg0, %c8_i32 : i32
    %45 = tpu.iota {dimensions = array<i32: 0>} : vector<8x128xi32>
    %46 = vector.broadcast %44 : i32 to vector<8x128xi32>
    %47 = arith.addi %46, %45 : vector<8x128xi32>
    %c0_i32_12 = arith.constant 0 : i32
    %48 = vector.broadcast %c0_i32_12 : i32 to vector<8x128xi32>
    %49 = arith.cmpi sge, %5, %48 : vector<8x128xi32>
    %c8_i32_13 = arith.constant 8 : i32
    %50 = vector.broadcast %c8_i32_13 : i32 to vector<8x128xi32>
    %51 = arith.cmpi slt, %47, %50 : vector<8x128xi32>
    %52 = arith.andi %49, %51 : vector<8x128xi1>
    %cst_14 = arith.constant 0.000000e+00 : f32
    %53 = vector.broadcast %cst_14 : f32 to vector<8x128xf32>
    %54 = arith.select %52, %43, %53 : vector<8x128xi1>, vector<8x128xf32>
    %c0_15 = arith.constant 0 : index
    %c0_16 = arith.constant 0 : index
    %55 = vector.load %arg4[%c0_15, %c0_16] : memref<8x128xf32, #tpu.memory_space<vmem>>, vector<8x128xf32>
    %56 = arith.addf %55, %54 : vector<8x128xf32>
    %c0_17 = arith.constant 0 : index
    %c0_18 = arith.constant 0 : index
    %57 = vector.load %arg4[%c0_17, %c0_18] : memref<8x128xf32, #tpu.memory_space<vmem>>, vector<8x128xf32>
    tpu.vector_store %arg4[%c0_17, %c0_18], %56 {strides = array<i32>} : memref<8x128xf32, #tpu.memory_space<vmem>>, vector<8x128xf32>,
    %c0_i32_19 = arith.constant 0 : i32
    %58 = arith.cmpi eq, %arg0, %c0_i32_19 : i32
    %59 = arith.extui %58 : i1 to i32
    %c0_i32_20 = arith.constant 0 : i32
    %60 = arith.cmpi ne, %59, %c0_i32_20 : i32
    scf.if %60 {
      %c0_21 = arith.constant 0 : index
      %c0_22 = arith.constant 0 : index
      %61 = vector.load %arg4[%c0_21, %c0_22] : memref<8x128xf32, #tpu.memory_space<vmem>>, vector<8x128xf32>
      %62 = vector.shape_cast %61 : vector<8x128xf32> to vector<1x8x128xf32>
      %cst_23 = arith.constant dense<0.000000e+00> : vector<1xf32>
      %63 = vector.multi_reduction <add>, %62, %cst_23 [1, 2] : vector<1x8x128xf32> to vector<1xf32>
      %64 = vector.shape_cast %63 : vector<1xf32> to vector<1x1x1xf32>
      %65 = vector.extract %64[0, 0, 0] : f32 from vector<1x1x1xf32>
      %66 = vector.broadcast %65 : f32 to vector<1x1xf32>
      %c0_24 = arith.constant 0 : index
      %c0_25 = arith.constant 0 : index
      %67 = vector.load %arg3[%c0_24, %c0_25] : memref<1x1xf32, #tpu.memory_space<vmem>>, vector<1x1xf32>
      tpu.vector_store %arg3[%c0_24, %c0_25], %66 {strides = array<i32>} : memref<1x1xf32, #tpu.memory_space<vmem>>, vector<1x1xf32>,
    } else {
    }
    return
  }
  func.func @transform_0(%arg0: i32) -> (i32, i32) {
    %c0_i32 = arith.constant 0 : i32
    %c0_i32_0 = arith.constant 0 : i32
    return %arg0, %c0_i32 : i32, i32
  }
  func.func @transform_1(%arg0: i32) -> (i32, i32) {
    %c0_i32 = arith.constant 0 : i32
    %c0_i32_0 = arith.constant 0 : i32
    return %arg0, %c0_i32 : i32, i32
  }
  func.func @transform_2(%arg0: i32) -> (i32, i32) {
    %c0_i32 = arith.constant 0 : i32
    %c0_i32_0 = arith.constant 0 : i32
    %c0_i32_1 = arith.constant 0 : i32
    return %c0_i32, %c0_i32_0 : i32, i32
  }
}

</mosaic_0001>

<llo_original>
// kernel: tpu_custom_call.1
$region0: #{tpu_custom_call.1}
  #allocation0 [shape = 'u32[]', space=smem, size = 0x4, offset = 0x4, fixed_abs, tag = 'smem constant byte address 0x4 - core index']
  #allocation1 [shape = 'u32[72,128]{1,0:T(1,128)}', space=vmem, size = 0x9000, scoped, tag = 'internal scratch']
  #allocation2 [shape = 'f32[8,128]{1,0:T(8,128)}', space=vmem, size = 0x1000, scoped, tag = 'scratch operand']
  %s0 = inlined_call_operand.hbm [shape: f32[8,128], index: 0, kind: input, shape index: {}]
  %s1 = inlined_call_operand.hbm [shape: s8[8,128], index: 1, kind: input, shape index: {}]
  %s2 = inlined_call_operand.hbm [shape: f32[1,1], index: 2, kind: output, shape index: {}]
  %s3 = sld [smem:[#allocation0]]
  $region34: #{tpu_custom_call.1} parent=0
    _
  %s5 = ssub.s32 1, %s3
  %s6 = scalar_select 0, %s5, %s3
  $region1: #{tpu_custom_call.1} parent=0
    #allocation3 [shape = 'u8[4096]{0}', space=vmem, size = 0x1000, scoped, tag = 'input window, operand 0, single buffered']
    #allocation4 [shape = 's32[1]{0}', space=sflag, size = 0x4, scoped, tag = 'scoped memory for tpu_custom_call.1']
    #allocation5 [shape = 's32[1]{0}', space=sflag, size = 0x4, scoped, tag = 'scoped memory for tpu_custom_call.1']
    #allocation6 [shape = 'u8[1024]{0}', space=vmem, size = 0x400, scoped, tag = 'input window, operand 1, single buffered']
    #allocation7 [shape = 's32[1]{0}', space=sflag, size = 0x4, scoped, tag = 'scoped memory for tpu_custom_call.1']
    #allocation8 [shape = 'u8[512]{0}', space=vmem, size = 0x400, scoped, tag = 'output window, operand 0, single buffered']
    %7 = vsyncpa [#allocation4], 0
    %8 = vsyncpa [#allocation7], 0
    %9 = vsyncpa [#allocation5], 0
    // Predicated region
    $region2: #{tpu_custom_call.1} parent=1 // pred_check
      _
    $region3: #{tpu_custom_call.1} parent=1 // pred_check_branch
      %11 = sbr.rel (0) target = $region5
    $region4: #{tpu_custom_call.1} parent=1 // pred_region
      %13 = vsyncadd [#allocation4], 0
      %s15 = sshll.u32 %s0, 4
      %s16 = int_to_ptr.hbm [resolvable:$true] %s15
      %s17 = sshll.u32 [#allocation3], 4
      %s18 = int_to_ptr.vmem [resolvable:$true] %s17
      %20 = dma.hbm_to_vmem [thread:$0]  %s16, 128, %s18, [#allocation4]
    $region5: #{tpu_custom_call.1} parent=1 // pred_fallthru
      _
    // Predicated region
    $region6: #{tpu_custom_call.1} parent=1 // pred_check
      _
    $region7: #{tpu_custom_call.1} parent=1 // pred_check_branch
      %22 = sbr.rel (0) target = $region9
    $region8: #{tpu_custom_call.1} parent=1 // pred_region
      %24 = vsyncadd [#allocation7], 0
      %s26 = sshll.u32 %s1, 4
      %s27 = int_to_ptr.hbm [resolvable:$true] %s26
      %s28 = sshll.u32 [#allocation6], 4
      %s29 = int_to_ptr.vmem [resolvable:$true] %s28
      %31 = dma.hbm_to_vmem [thread:$0]  %s27, 32, %s29, [#allocation7]
    $region9: #{tpu_custom_call.1} parent=1 // pred_fallthru
      _
    // Predicated region
    $region10: #{tpu_custom_call.1} parent=1 // pred_check
      _
    $region11: #{tpu_custom_call.1} parent=1 // pred_check_branch
      %33 = sbr.rel (0) target = $region13
    $region12: #{tpu_custom_call.1} parent=1 // pred_region
      %35 = dma.done [#allocation4], 128
    $region13: #{tpu_custom_call.1} parent=1 // pred_fallthru
      _
    // Predicated region
    $region14: #{tpu_custom_call.1} parent=1 // pred_check
      _
    $region15: #{tpu_custom_call.1} parent=1 // pred_check_branch
      %37 = sbr.rel (0) target = $region17
    $region16: #{tpu_custom_call.1} parent=1 // pred_region
      %39 = dma.done [#allocation7], 32
    $region17: #{tpu_custom_call.1} parent=1 // pred_fallthru
      _
    %p40 = scmp.eq.s32.totalorder 0, 0
    // Predicated region
    $region18: #{tpu_custom_call.1} parent=1 // pred_check
      %p41 = pneg %p40
    $region19: #{tpu_custom_call.1} parent=1 // pred_check_branch
      %43 = sbr.rel (%p41) target = $region21
    $region20: #{tpu_custom_call.1} parent=1 // pred_region
      %44 = vst [vmem:[#allocation2] sm:$0xff] 0.0
    $region21: #{tpu_custom_call.1} parent=1 // pred_fallthru
      _
    %v45 = vld [vmem:[#allocation3] sm:$0xff]
    %v46 = vld [vmem:[#allocation6] sm:$0x3]
    %v47 = vunpack.c.0.s8 %v46
    %v48 = vlaneseq
    %v49 = vand.u32 %v48, 127
    %v50 = vand.u32 %v49, 15
    %vm51 = vcmp.eq.s32.totalorder %v50, %v47
    %v52 = vsel %vm51, 1, 0
    %v53 = vcvt.s32.f32 %v52
    %v54 = vand.u32 2147483647, %v45
    %v55 = vsub.f32 0.0, %v54
    %v56 = vmul.f32 %v55, 1.442695
    %v57 = vpow.pop %v56
    %v58 = vmax.f32 %v45, 0.0
    %v59 = vmul.f32 %v45, %v53
    %v60 = vsub.f32 %v58, %v59
    %v61 = vadd.f32 %v57, 1.0
    %v62 = vlog2.pop %v61
    %v63 = vmul.f32 %v62, 0.6931472
    %v64 = vmul.f32 -0.5, %v57
    %v65 = vadd.f32 %v64, 1.0
    %v66 = vmul.f32 %v65, %v57
    %v67 = vand.u32 2147483647, %v57
    %vm68 = vcmp.lt.f32.partialorder %v67, 0.0004427343
    %v69 = vsel %vm68, %v66, %v63
    %v70 = vadd.f32 %v60, %v69
    %v71 = vadd.f32 %v57, 1.0
    %v72 = vrcp.pop %v71
    %v73 = vmul.f32 %v71, %v72
    %v74 = vsub.f32 2.0, %v73
    %v75 = vmul.f32 %v72, %v74
    %v76 = vmul.f32 %v53, 2.0
    %v77 = vsub.f32 %v76, 1.0
    %v78 = vmul.f32 %v45, %v77
    %vm79 = vcmp.ge.f32.partialorder %v78, 0.0
    %v80 = vmul.f32 %v57, %v75
    %v81 = vsel %vm79, %v75, %v80
    %v82 = vsub.f32 1.0, %v81
    %v83 = vmul.f32 %v82, %v82
    %v84 = vmul.f32 %v83, %v70
    %s85 = smul.u32 0, 8
    %v86 = vlaneseq
    %v87 = vshrl.u32 %v86, 7
    %v88 = vstv %s85
    %v89 = vadd.s32 %v88, %v87
    %vm90 = vcmp.ge.s32.totalorder %v47, 0
    %vm91 = vcmp.lt.s32.totalorder %v89, 8
    %vm92 = vmand %vm90, %vm91
    %v93 = vsel %vm92, %v84, 0.0
    %v94 = vld [vmem:[#allocation2] sm:$0xff]
    %v95 = vadd.f32 %v94, %v93
    %96 = vst [vmem:[#allocation2] sm:$0xff] %v95
    // Predicated region
    $region22: #{tpu_custom_call.1} parent=1 // pred_check
      %p97 = pneg %p40
    $region23: #{tpu_custom_call.1} parent=1 // pred_check_branch
      %99 = sbr.rel (%p97) target = $region25
    $region24: #{tpu_custom_call.1} parent=1 // pred_region
      %v100 = vld [vmem:[#allocation2] sm:$0xff]
      %101 = vadd.xlane.f32.xlu0 %v100
      %v102 = vpop.xlane.xlu0 %101
      %v103 = vrot.slane %v102, 4
      %v104 = vadd.f32 %v102, %v103
      %v105 = vrot.slane %v104, 2
      %v106 = vadd.f32 %v104, %v105
      %v107 = vrot.slane %v106, 1
      %v108 = vadd.f32 %v106, %v107
      %s109 = vtos %v108
      %v110 = vstv %s109
      %vm111 = vcmask 0
      %112 = vst.msk [vmem:[#allocation8] sm:$0x1] %vm111, %v110
    $region25: #{tpu_custom_call.1} parent=1 // pred_fallthru
      _
    // Predicated region
    $region26: #{tpu_custom_call.1} parent=1 // pred_check
      _
    $region27: #{tpu_custom_call.1} parent=1 // pred_check_branch
      %114 = sbr.rel (0) target = $region29
    $region28: #{tpu_custom_call.1} parent=1 // pred_region
      %116 = vsyncadd [#allocation5], 0
      %s118 = sshll.u32 [#allocation8], 4
      %s119 = int_to_ptr.vmem [resolvable:$true] %s118
      %s120 = sshll.u32 %s2, 4
      %s121 = int_to_ptr.hbm [resolvable:$true] %s120
      %123 = dma.vmem_to_hbm [thread:$0]  %s119, 16, %s121, [#allocation5]
    $region29: #{tpu_custom_call.1} parent=1 // pred_fallthru
      _
    // Predicated region
    $region30: #{tpu_custom_call.1} parent=1 // pred_check
      _
    $region31: #{tpu_custom_call.1} parent=1 // pred_check_branch
      %125 = sbr.rel (0) target = $region33
    $region32: #{tpu_custom_call.1} parent=1 // pred_region
      %127 = dma.done [#allocation5], 16
    $region33: #{tpu_custom_call.1} parent=1 // pred_fallthru
      _
    %128 = vsyncpa [#allocation4], 1
    %129 = vsyncpa [#allocation7], 1
    %130 = vsyncpa [#allocation5], 1

</llo_original>
